<compile_context>
chip_gen: v7x
topology: tpu7x:2x2x1
jax: 0.10.0
libtpu: 0.0.40
codegen_flags: <defaults>
</compile_context>

<pallas_src>
from functools import partial

import jax
import jax.numpy as jnp
from jax.experimental import pallas as pl
from jax.experimental.pallas import tpu as pltpu


# ---------------------------------------------------------------------------
# Kernels
# ---------------------------------------------------------------------------
def _matmul_bias_kernel(x_ref, w_ref, b_ref, o_ref):
    acc = jnp.dot(x_ref[...], w_ref[...], preferred_element_type=jnp.float32)
    o_ref[...] = (acc + b_ref[...]).astype(o_ref.dtype)


def matmul_bias(x, w, b, *, out_dtype=jnp.float32, tm_target=256, tn_target=512):
    """x: (M, K) bf16, w: (K, N) bf16, b: (1, N) f32 -> (M, N) out_dtype.
    Tiled over rows/cols ("parallel","parallel"); K (= dim, small) stays resident."""
    M, K = x.shape
    _, Nout = w.shape
    tm = M if M <= tm_target else tm_target          # tm_target is a multiple of 8
    tn = Nout if Nout <= tn_target else tn_target    # tn_target is a multiple of 128
    grid = (pl.cdiv(M, tm), pl.cdiv(Nout, tn))
    return pl.pallas_call(
        _matmul_bias_kernel,
        out_shape=jax.ShapeDtypeStruct((M, Nout), out_dtype),
        grid=grid,
        in_specs=[
            pl.BlockSpec((tm, K), lambda i, j: (i, 0)),
            pl.BlockSpec((K, tn), lambda i, j: (0, j)),
            pl.BlockSpec((1, tn), lambda i, j: (0, j)),
        ],
        out_specs=pl.BlockSpec((tm, tn), lambda i, j: (i, j)),
        compiler_params=pltpu.CompilerParams(
            dimension_semantics=("parallel", "parallel")),
    )(x, w, b)


def _matmul_bias_ln_kernel(x_ref, w_ref, b_ref, g_ref, bt_ref, o_ref, *, eps):
    acc = jnp.dot(x_ref[...], w_ref[...], preferred_element_type=jnp.float32)
    acc = acc + b_ref[...]
    mean = jnp.mean(acc, axis=-1, keepdims=True)
    var = jnp.mean((acc - mean) ** 2, axis=-1, keepdims=True)
    xn = (acc - mean) * jax.lax.rsqrt(var + eps)
    o_ref[...] = (xn * g_ref[...] + bt_ref[...]).astype(o_ref.dtype)


def matmul_bias_layernorm(x, w, b, gamma, beta, *, out_dtype=jnp.float32,
                          tm_target=256, eps=1e-5):
    """(x @ w + b) then LayerNorm over the last dim, fused in one kernel.
    Tiled over rows; the full output width (= dim) stays resident so the
    row-wise LayerNorm reduction is local (VPU/EUP work hides under the MXU)."""
    M, K = x.shape
    _, Nout = w.shape
    tm = M if M <= tm_target else tm_target
    return pl.pallas_call(
        partial(_matmul_bias_ln_kernel, eps=eps),
        out_shape=jax.ShapeDtypeStruct((M, Nout), out_dtype),
        grid=(pl.cdiv(M, tm),),
        in_specs=[
            pl.BlockSpec((tm, K), lambda i: (i, 0)),
            pl.BlockSpec((K, Nout), lambda i: (0, 0)),
            pl.BlockSpec((1, Nout), lambda i: (0, 0)),
            pl.BlockSpec((1, Nout), lambda i: (0, 0)),
            pl.BlockSpec((1, Nout), lambda i: (0, 0)),
        ],
        out_specs=pl.BlockSpec((tm, Nout), lambda i: (i, 0)),
        compiler_params=pltpu.CompilerParams(dimension_semantics=("parallel",)),
    )(x, w, b, gamma, beta)


def _fused_qkv_attn_proj_kernel(x_ref, kv_ref, wq_ref, bq_ref, wp_ref, bp_ref,
                                o_ref, *, num_heads, head_dim, scale):
    """Per (batch, query-tile): q = x @ Wq + bq, per-head softmax attention
    against the resident (Nk, 2C) K/V block, and the output projection — all
    fused so q and the attention output never leave VMEM."""
    nh, hd = num_heads, head_dim
    C = nh * hd
    f32 = jnp.float32

    x = x_ref[0]                       # (tq, C)   bf16
    kv = kv_ref[0]                     # (Nk, 2C)  bf16: K in [:, :C], V in [:, C:]
    wp = wp_ref[...]                   # (C, C)    bf16

    # q projection (MXU, f32 accumulate), bias in f32, back to bf16 for scores.
    q = jnp.dot(x, wq_ref[...], preferred_element_type=f32) + bq_ref[...]
    q = q.astype(x.dtype)

    acc = jnp.zeros((q.shape[0], C), dtype=f32)
    for h in range(nh):                # static unroll: per-head 2-D MXU matmuls
        lo, hi = h * hd, (h + 1) * hd
        qh = q[:, lo:hi]
        kh = kv[:, lo:hi]
        vh = kv[:, C + lo:C + hi]
        # q @ k^T without materializing a transpose.
        s = jax.lax.dot_general(qh, kh, (((1,), (1,)), ((), ())),
                                preferred_element_type=f32) * scale
        m = jnp.max(s, axis=-1, keepdims=True)
        p = jnp.exp(s - m)
        denom = jnp.sum(p, axis=-1, keepdims=True)
        p = (p * pl.reciprocal(denom, approx=True)).astype(x.dtype)  # EUP slot
        oh = jnp.dot(p, vh, preferred_element_type=f32).astype(x.dtype)
        # Fold the output projection per head: acc += o_h @ Wp[h*hd:(h+1)*hd, :]
        acc = acc + jnp.dot(oh, wp[lo:hi, :], preferred_element_type=f32)

    # Single lane-dense (full-C) store in token-major layout.
    o_ref[0] = (acc + bp_ref[...]).astype(o_ref.dtype)


def fused_attention(x, kv, w_q, b_q, w_proj, b_proj, num_heads, head_dim, scale,
                    *, q_block=256, out_dtype=jnp.float32):
    """x: (B, N, C) bf16, kv: (B, Nk, 2C) bf16 -> (B, N, C) out_dtype.
    Grid = (batch, query tiles); the query-tile axis is innermost so K/V and the
    weights stay VMEM-resident per batch element (constant block index)."""
    B, N, C = x.shape
    _, Nk, C2 = kv.shape
    tq = N if N <= q_block else q_block
    grid = (B, pl.cdiv(N, tq))
    # TODO(synk): for very large Nk (sr_ratio == 1 at high resolution) add a
    # third "arbitrary" Nk grid axis with a flash-style online-softmax
    # accumulator instead of keeping the whole K/V block resident.
    return pl.pallas_call(
        partial(_fused_qkv_attn_proj_kernel, num_heads=num_heads,
                head_dim=head_dim, scale=scale),
        out_shape=jax.ShapeDtypeStruct((B, N, C), out_dtype),
        grid=grid,
        in_specs=[
            pl.BlockSpec((1, tq, C), lambda b, i: (b, i, 0)),
            pl.BlockSpec((1, Nk, C2), lambda b, i: (b, 0, 0)),
            pl.BlockSpec((C, C), lambda b, i: (0, 0)),
            pl.BlockSpec((1, C), lambda b, i: (0, 0)),
            pl.BlockSpec((C, C), lambda b, i: (0, 0)),
            pl.BlockSpec((1, C), lambda b, i: (0, 0)),
        ],
        out_specs=pl.BlockSpec((1, tq, C), lambda b, i: (b, i, 0)),
        compiler_params=pltpu.CompilerParams(
            dimension_semantics=("parallel", "parallel")),
    )(x, kv, w_q, b_q, w_proj, b_proj)


# ---------------------------------------------------------------------------
# Module wrapper (parameters + glue reshapes in plain JAX)
# ---------------------------------------------------------------------------
class AttentionPallas:
    def __init__(self, dim, num_heads=8, qkv_bias=False, qk_scale=None,
                 sr_ratio=1, q_block=256, key=None):
        assert dim % num_heads == 0
        self.dim = dim
        self.num_heads = num_heads
        self.head_dim = dim // num_heads
        self.scale = qk_scale or self.head_dim ** (-0.5)
        self.sr_ratio = sr_ratio
        self.q_block = q_block

        if key is None:
            key = jax.random.PRNGKey(0)
        ks = jax.random.split(key, 8)
        init = lambda k, shape: (0.02 * jax.random.normal(k, shape)).astype(jnp.float32)
        bf16 = jnp.bfloat16

        # Linear weights stored as (in, out); PyTorch applies x @ W.T + b.
        self.w_q = init(ks[0], (dim, dim))
        self.b_q = (init(ks[1], (1, dim)) if qkv_bias
                    else jnp.zeros((1, dim), jnp.float32))
        self.w_kv = init(ks[2], (dim, 2 * dim))
        self.b_kv = (init(ks[3], (1, 2 * dim)) if qkv_bias
                     else jnp.zeros((1, 2 * dim), jnp.float32))
        self.w_proj = init(ks[4], (dim, dim))
        self.b_proj = init(ks[5], (1, dim))
        # bf16 copies used at the pallas_call boundary (f32 accumulation inside).
        self.w_q_bf = self.w_q.astype(bf16)
        self.w_kv_bf = self.w_kv.astype(bf16)
        self.w_proj_bf = self.w_proj.astype(bf16)

        if sr_ratio > 1:
            # Conv2d(dim, dim, kernel=sr, stride=sr) weight: (C_out, C_in, kh, kw).
            # Patch rows are ordered (kh, kw, C_in) with channels minor, so the
            # patch gather only swaps two middle axes of x (no channel transpose).
            w_conv = init(ks[6], (dim, dim, sr_ratio, sr_ratio))
            self.w_sr = w_conv.transpose(2, 3, 1, 0).reshape(
                sr_ratio * sr_ratio * dim, dim)
            self.w_sr_bf = self.w_sr.astype(bf16)
            self.b_sr = init(ks[7], (1, dim))
            self.ln_gamma = jnp.ones((1, dim), jnp.float32)
            self.ln_beta = jnp.zeros((1, dim), jnp.float32)

    def __call__(self, x, H, W):
        B, N, C = x.shape
        nh, hd, sr = self.num_heads, self.head_dim, self.sr_ratio
        bf16 = jnp.bfloat16
        xb = x.astype(bf16)

        if sr > 1:
            # Non-overlapping sr x sr patch conv == patch gather + matmul,
            # with bias add + LayerNorm fused into the same kernel.
            Hs, Ws = H // sr, W // sr
            patches = xb.reshape(B, Hs, sr, Ws, sr, C).transpose(0, 1, 3, 2, 4, 5)
            patches = patches.reshape(B * Hs * Ws, sr * sr * C)
            x_ = matmul_bias_layernorm(patches, self.w_sr_bf, self.b_sr,
                                       self.ln_gamma, self.ln_beta,
                                       out_dtype=bf16)
            Nk = Hs * Ws
        else:
            x_ = xb.reshape(B * N, C)
            Nk = N

        # kv = self.kv(x_): K in columns [:C], V in columns [C:].
        kv = matmul_bias(x_, self.w_kv_bf, self.b_kv,
                         out_dtype=bf16).reshape(B, Nk, 2 * C)

        # q projection + multi-head attention + output projection, fused.
        out = fused_attention(xb, kv, self.w_q_bf, self.b_q,
                              self.w_proj_bf, self.b_proj,
                              nh, hd, self.scale, q_block=self.q_block,
                              out_dtype=jnp.float32)
        return out


# ---------------------------------------------------------------------------
# Pure-JAX reference mirroring the bf16-boundary / f32-accumulate pipeline
# (exact softmax division instead of approx reciprocal).
# ---------------------------------------------------------------------------
def reference_forward(m, x, H, W):
    f32, bf16 = jnp.float32, jnp.bfloat16
    B, N, C = x.shape
    nh, hd, sr = m.num_heads, m.head_dim, m.sr_ratio
    xb = x.astype(bf16)

    def mm(a_bf, w_bf, b):
        return jnp.dot(a_bf.astype(f32), w_bf.astype(f32)) + b

    q = mm(xb.reshape(B * N, C), m.w_q_bf, m.b_q).astype(bf16).reshape(B, N, C)

    if sr > 1:
        Hs, Ws = H // sr, W // sr
        patches = xb.reshape(B, Hs, sr, Ws, sr, C).transpose(0, 1, 3, 2, 4, 5)
        patches = patches.reshape(B * Hs * Ws, sr * sr * C)
        h_ = mm(patches, m.w_sr_bf, m.b_sr)
        mu = jnp.mean(h_, axis=-1, keepdims=True)
        var = jnp.mean((h_ - mu) ** 2, axis=-1, keepdims=True)
        x_ = (((h_ - mu) * jax.lax.rsqrt(var + 1e-5)) * m.ln_gamma
              + m.ln_beta).astype(bf16)
        Nk = Hs * Ws
    else:
        x_ = xb.reshape(B * N, C)
        Nk = N

    kv = mm(x_, m.w_kv_bf, m.b_kv).astype(bf16).reshape(B, Nk, 2 * C)
    k = kv[:, :, :C].reshape(B, Nk, nh, hd)
    v = kv[:, :, C:].reshape(B, Nk, nh, hd)
    qh = q.reshape(B, N, nh, hd)

    s = jnp.einsum('bqhd,bkhd->bhqk', qh.astype(f32), k.astype(f32)) * m.scale
    p = jax.nn.softmax(s, axis=-1)
    o = jnp.einsum('bhqk,bkhd->bqhd', p.astype(bf16).astype(f32), v.astype(f32))
    o = o.reshape(B * N, C).astype(bf16)

    out = mm(o, m.w_proj_bf, m.b_proj)
    return out.reshape(B, N, C)


if __name__ == "__main__":
    B, C, H, W = 2, 32, 16, 16
    num_heads = 8
    N = H * W

    key = jax.random.PRNGKey(0)
    k_param, k_x = jax.random.split(key)
    x = jax.random.normal(k_x, (B, N, C), dtype=jnp.float32)

    ok = True
    for sr_ratio in (2, 1):   # exercise both the sr-conv path and the plain path
        module = AttentionPallas(dim=C, num_heads=num_heads, qkv_bias=False,
                                 sr_ratio=sr_ratio, q_block=256, key=k_param)
        out = jax.block_until_ready(module(x, H, W))
        ref = reference_forward(module, x, H, W)
        assert out.shape == (B, N, C)
        max_err = float(jnp.max(jnp.abs(out - ref)))
        if not jnp.allclose(out, ref, atol=2e-3, rtol=2e-2):
            ok = False
            raise AssertionError(
                f"sr_ratio={sr_ratio}: mismatch vs reference "
                f"(max abs err {max_err:.3e})")
    if ok:
        print("KERNEL_OK")
</pallas_src>

<mosaic_0001>
module attributes {stable_mosaic.version = 11 : i64} {
  func.func @_matmul_bias_ln_kernel(%arg0: i32, %arg1: memref<128x128xbf16, #tpu.memory_space<vmem>>, %arg2: memref<128x32xbf16, #tpu.memory_space<vmem>>, %arg3: memref<1x32xf32, #tpu.memory_space<vmem>>, %arg4: memref<1x32xf32, #tpu.memory_space<vmem>>, %arg5: memref<1x32xf32, #tpu.memory_space<vmem>>, %arg6: memref<128x32xbf16, #tpu.memory_space<vmem>>) attributes {dimension_semantics = [#tpu.dimension_semantics<parallel>], iteration_bounds = array<i64: 1>, scalar_prefetch = 0 : i64, scratch_operands = 0 : i64, tpu.core_type = #tpu.core_type<tc>, window_params = [{transform_indices = @transform_0, window_bounds = array<i64: 128, 128>}, {pipeline_mode = #tpu.pipeline_mode<synchronous>, transform_indices = @transform_1, window_bounds = array<i64: 128, 32>}, {pipeline_mode = #tpu.pipeline_mode<synchronous>, transform_indices = @transform_2, window_bounds = array<i64: 1, 32>}, {pipeline_mode = #tpu.pipeline_mode<synchronous>, transform_indices = @transform_3, window_bounds = array<i64: 1, 32>}, {pipeline_mode = #tpu.pipeline_mode<synchronous>, transform_indices = @transform_4, window_bounds = array<i64: 1, 32>}, {transform_indices = @transform_5, window_bounds = array<i64: 128, 32>}]} {
    %c0 = arith.constant 0 : index
    %c0_0 = arith.constant 0 : index
    %0 = vector.load %arg1[%c0, %c0_0] : memref<128x128xbf16, #tpu.memory_space<vmem>>, vector<128x128xbf16>
    %c0_1 = arith.constant 0 : index
    %c0_2 = arith.constant 0 : index
    %1 = vector.load %arg2[%c0_1, %c0_2] : memref<128x32xbf16, #tpu.memory_space<vmem>>, vector<128x32xbf16>
    %cst = arith.constant dense<0.000000e+00> : vector<128x32xf32>
    %2 = tpu.matmul %0, %1, %cst {dimension_numbers = #tpu.dot_dimension_numbers<[1], [0], [0], [1], [0, 0, 1, 1], [], []>} : vector<128x128xbf16>, vector<128x32xbf16>, vector<128x32xf32> -> vector<128x32xf32>
    %c0_3 = arith.constant 0 : index
    %c0_4 = arith.constant 0 : index
    %3 = vector.load %arg3[%c0_3, %c0_4] : memref<1x32xf32, #tpu.memory_space<vmem>>, vector<1x32xf32>
    %4 = vector.broadcast %3 : vector<1x32xf32> to vector<128x32xf32>
    %5 = arith.addf %2, %4 : vector<128x32xf32>
    %cst_5 = arith.constant dense<0.000000e+00> : vector<128xf32>
    %6 = vector.multi_reduction <add>, %5, %cst_5 [1] : vector<128x32xf32> to vector<128xf32>
    %7 = vector.shape_cast %6 : vector<128xf32> to vector<128x1xf32>
    %cst_6 = arith.constant 3.200000e+01 : f32
    %8 = vector.broadcast %cst_6 : f32 to vector<128x1xf32>
    %9 = arith.divf %7, %8 : vector<128x1xf32>
    %10 = vector.broadcast %9 : vector<128x1xf32> to vector<128x32xf32>
    %11 = arith.subf %5, %10 : vector<128x32xf32>
    %12 = arith.mulf %11, %11 : vector<128x32xf32>
    %cst_7 = arith.constant dense<0.000000e+00> : vector<128xf32>
    %13 = vector.multi_reduction <add>, %12, %cst_7 [1] : vector<128x32xf32> to vector<128xf32>
    %14 = vector.shape_cast %13 : vector<128xf32> to vector<128x1xf32>
    %cst_8 = arith.constant 3.200000e+01 : f32
    %15 = vector.broadcast %cst_8 : f32 to vector<128x1xf32>
    %16 = arith.divf %14, %15 : vector<128x1xf32>
    %17 = vector.broadcast %9 : vector<128x1xf32> to vector<128x32xf32>
    %18 = arith.subf %5, %17 : vector<128x32xf32>
    %cst_9 = arith.constant 9.99999974E-6 : f32
    %19 = vector.broadcast %cst_9 : f32 to vector<128x1xf32>
    %20 = arith.addf %16, %19 : vector<128x1xf32>
    %21 = math.rsqrt %20 : vector<128x1xf32>
    %22 = vector.broadcast %21 : vector<128x1xf32> to vector<128x32xf32>
    %23 = arith.mulf %18, %22 : vector<128x32xf32>
    %c0_10 = arith.constant 0 : index
    %c0_11 = arith.constant 0 : index
    %24 = vector.load %arg4[%c0_10, %c0_11] : memref<1x32xf32, #tpu.memory_space<vmem>>, vector<1x32xf32>
    %25 = vector.broadcast %24 : vector<1x32xf32> to vector<128x32xf32>
    %26 = arith.mulf %23, %25 : vector<128x32xf32>
    %c0_12 = arith.constant 0 : index
    %c0_13 = arith.constant 0 : index
    %27 = vector.load %arg5[%c0_12, %c0_13] : memref<1x32xf32, #tpu.memory_space<vmem>>, vector<1x32xf32>
    %28 = vector.broadcast %27 : vector<1x32xf32> to vector<128x32xf32>
    %29 = arith.addf %26, %28 : vector<128x32xf32>
    %30 = arith.truncf %29 : vector<128x32xf32> to vector<128x32xbf16>
    %c0_14 = arith.constant 0 : index
    %c0_15 = arith.constant 0 : index
    %31 = vector.load %arg6[%c0_14, %c0_15] : memref<128x32xbf16, #tpu.memory_space<vmem>>, vector<128x32xbf16>
    tpu.vector_store %arg6[%c0_14, %c0_15], %30 {strides = array<i32>} : memref<128x32xbf16, #tpu.memory_space<vmem>>, vector<128x32xbf16>,
    return
  }
  func.func @transform_0(%arg0: i32) -> (i32, i32) {
    %c0_i32 = arith.constant 0 : i32
    %c0_i32_0 = arith.constant 0 : i32
    return %arg0, %c0_i32 : i32, i32
  }
  func.func @transform_1(%arg0: i32) -> (i32, i32) {
    %c0_i32 = arith.constant 0 : i32
    %c0_i32_0 = arith.constant 0 : i32
    %c0_i32_1 = arith.constant 0 : i32
    return %c0_i32, %c0_i32_0 : i32, i32
  }
  func.func @transform_2(%arg0: i32) -> (i32, i32) {
    %c0_i32 = arith.constant 0 : i32
    %c0_i32_0 = arith.constant 0 : i32
    %c0_i32_1 = arith.constant 0 : i32
    return %c0_i32, %c0_i32_0 : i32, i32
  }
  func.func @transform_3(%arg0: i32) -> (i32, i32) {
    %c0_i32 = arith.constant 0 : i32
    %c0_i32_0 = arith.constant 0 : i32
    %c0_i32_1 = arith.constant 0 : i32
    return %c0_i32, %c0_i32_0 : i32, i32
  }
  func.func @transform_4(%arg0: i32) -> (i32, i32) {
    %c0_i32 = arith.constant 0 : i32
    %c0_i32_0 = arith.constant 0 : i32
    %c0_i32_1 = arith.constant 0 : i32
    return %c0_i32, %c0_i32_0 : i32, i32
  }
  func.func @transform_5(%arg0: i32) -> (i32, i32) {
    %c0_i32 = arith.constant 0 : i32
    %c0_i32_0 = arith.constant 0 : i32
    return %arg0, %c0_i32 : i32, i32
  }
}

</mosaic_0001>

<llo_original>
// kernel: tpu_custom_call.1
$region0: #{tpu_custom_call.1}
  #allocation0 [shape = 'u32[]', space=smem, size = 0x4, offset = 0x4, fixed_abs, tag = 'smem constant byte address 0x4 - core index']
  #allocation1 [shape = 'u32[144,128]{1,0:T(1,128)}', space=vmem, size = 0x12000, scoped, tag = 'internal scratch']
  %s0 = inlined_call_operand.vmem [shape: bf16[128,128], index: 0, kind: input, shape index: {}]
  %s1 = inlined_call_operand.vmem [shape: bf16[128,32], index: 1, kind: input, shape index: {}]
  %s2 = inlined_call_operand.vmem [shape: f32[1,32], index: 2, kind: input, shape index: {}]
  %s3 = inlined_call_operand.vmem [shape: f32[1,32], index: 3, kind: input, shape index: {}]
  %s4 = inlined_call_operand.vmem [shape: f32[1,32], index: 4, kind: input, shape index: {}]
  %s5 = inlined_call_operand.vmem [shape: bf16[128,32], index: 5, kind: output, shape index: {}]
  %s6 = sld [smem:[#allocation0]]
  $region30: #{tpu_custom_call.1} parent=0
    _
  %s8 = ssub.s32 1, %s6
  %s9 = scalar_select 0, %s8, %s6
  // Predicated region
  $region2: #{tpu_custom_call.1} parent=0 // pred_check
    _
  $region3: #{tpu_custom_call.1} parent=0 // pred_check_branch
    %11 = sbr.rel (0) target = $region5
  $region4: #{tpu_custom_call.1} parent=0 // pred_region
    _
  $region5: #{tpu_custom_call.1} parent=0 // pred_fallthru
    _
  // Predicated region
  $region6: #{tpu_custom_call.1} parent=0 // pred_check
    _
  $region7: #{tpu_custom_call.1} parent=0 // pred_check_branch
    %13 = sbr.rel (0) target = $region9
  $region8: #{tpu_custom_call.1} parent=0 // pred_region
    _
  $region9: #{tpu_custom_call.1} parent=0 // pred_fallthru
    _
  // Predicated region
  $region10: #{tpu_custom_call.1} parent=0 // pred_check
    _
  $region11: #{tpu_custom_call.1} parent=0 // pred_check_branch
    %15 = sbr.rel (0) target = $region13
  $region12: #{tpu_custom_call.1} parent=0 // pred_region
    _
  $region13: #{tpu_custom_call.1} parent=0 // pred_fallthru
    _
  // Predicated region
  $region14: #{tpu_custom_call.1} parent=0 // pred_check
    _
  $region15: #{tpu_custom_call.1} parent=0 // pred_check_branch
    %17 = sbr.rel (0) target = $region17
  $region16: #{tpu_custom_call.1} parent=0 // pred_region
    _
  $region17: #{tpu_custom_call.1} parent=0 // pred_fallthru
    _
  // Predicated region
  $region18: #{tpu_custom_call.1} parent=0 // pred_check
    _
  $region19: #{tpu_custom_call.1} parent=0 // pred_check_branch
    %19 = sbr.rel (0) target = $region21
  $region20: #{tpu_custom_call.1} parent=0 // pred_region
    _
  $region21: #{tpu_custom_call.1} parent=0 // pred_fallthru
    _
  %v21 = vld [vmem:[%s0] sm:$0xf]
  %v22 = vld [vmem:[%s0 + $0x4] sm:$0xf]
  %v23 = vld [vmem:[%s0 + $0x8] sm:$0xf]
  %v24 = vld [vmem:[%s0 + $0xc] sm:$0xf]
  %v25 = vld [vmem:[%s0 + $0x10] sm:$0xf]
  %v26 = vld [vmem:[%s0 + $0x14] sm:$0xf]
  %v27 = vld [vmem:[%s0 + $0x18] sm:$0xf]
  %v28 = vld [vmem:[%s0 + $0x1c] sm:$0xf]
  %v29 = vld [vmem:[%s0 + $0x20] sm:$0xf]
  %v30 = vld [vmem:[%s0 + $0x24] sm:$0xf]
  %v31 = vld [vmem:[%s0 + $0x28] sm:$0xf]
  %v32 = vld [vmem:[%s0 + $0x2c] sm:$0xf]
  %v33 = vld [vmem:[%s0 + $0x30] sm:$0xf]
  %v34 = vld [vmem:[%s0 + $0x34] sm:$0xf]
  %v35 = vld [vmem:[%s0 + $0x38] sm:$0xf]
  %v36 = vld [vmem:[%s0 + $0x3c] sm:$0xf]
  %v37 = vld [vmem:[%s1] sm:$0xf]
  %v38 = vld [vmem:[%s1 + $0x4] sm:$0xf]
  %v39 = vld [vmem:[%s1 + $0x8] sm:$0xf]
  %v40 = vld [vmem:[%s1 + $0xc] sm:$0xf]
  %v41 = vld [vmem:[%s1 + $0x10] sm:$0xf]
  %v42 = vld [vmem:[%s1 + $0x14] sm:$0xf]
  %v43 = vld [vmem:[%s1 + $0x18] sm:$0xf]
  %v44 = vld [vmem:[%s1 + $0x1c] sm:$0xf]
  %v45 = vld [vmem:[%s1 + $0x20] sm:$0xf]
  %v46 = vld [vmem:[%s1 + $0x24] sm:$0xf]
  %v47 = vld [vmem:[%s1 + $0x28] sm:$0xf]
  %v48 = vld [vmem:[%s1 + $0x2c] sm:$0xf]
  %v49 = vld [vmem:[%s1 + $0x30] sm:$0xf]
  %v50 = vld [vmem:[%s1 + $0x34] sm:$0xf]
  %v51 = vld [vmem:[%s1 + $0x38] sm:$0xf]
  %v52 = vld [vmem:[%s1 + $0x3c] sm:$0xf]
  %v53 = vld [vmem:[%s2] sm:$0x1]
  %v55 = vlaneseq
  %v56 = vshrl.u32 %v55, 7
  %v57 = vsub.s32 0, %v56
  %v58 = vrot.slane %v53, %v57
  %v76 = vunpack.c.l.b16 %v21
  %v77 = vunpack.c.l.b16 %v22
  %v78 = vunpack.c.l.b16 %v23
  %v79 = vunpack.c.l.b16 %v24
  %v80 = vunpack.c.l.b16 %v25
  %v81 = vunpack.c.l.b16 %v26
  %v82 = vunpack.c.l.b16 %v27
  %v83 = vunpack.c.l.b16 %v28
  %v84 = vunpack.c.l.b16 %v29
  %v85 = vunpack.c.l.b16 %v30
  %v86 = vunpack.c.l.b16 %v31
  %v87 = vunpack.c.l.b16 %v32
  %v88 = vunpack.c.l.b16 %v33
  %v89 = vunpack.c.l.b16 %v34
  %v90 = vunpack.c.l.b16 %v35
  %v91 = vunpack.c.l.b16 %v36
  %v92 = vpack.c.b16 %v77, %v76
  %v93 = vpack.c.b16 %v79, %v78
  %v94 = vpack.c.b16 %v81, %v80
  %v95 = vpack.c.b16 %v83, %v82
  %v96 = vpack.c.b16 %v85, %v84
  %v97 = vpack.c.b16 %v87, %v86
  %v98 = vpack.c.b16 %v89, %v88
  %v99 = vpack.c.b16 %v91, %v90
  %v124 = vunpack.c.l.b16 %v37
  %v125 = vunpack.c.l.b16 %v38
  %v126 = vunpack.c.l.b16 %v39
  %v127 = vunpack.c.l.b16 %v40
  %v128 = vunpack.c.l.b16 %v41
  %v129 = vunpack.c.l.b16 %v42
  %v130 = vunpack.c.l.b16 %v43
  %v131 = vunpack.c.l.b16 %v44
  %v132 = vunpack.c.l.b16 %v45
  %v133 = vunpack.c.l.b16 %v46
  %v134 = vunpack.c.l.b16 %v47
  %v135 = vunpack.c.l.b16 %v48
  %v136 = vunpack.c.l.b16 %v49
  %v137 = vunpack.c.l.b16 %v50
  %v138 = vunpack.c.l.b16 %v51
  %v139 = vunpack.c.l.b16 %v52
  %v140 = vpack.c.b16 %v125, %v124
  %v141 = vpack.c.b16 %v127, %v126
  %v142 = vpack.c.b16 %v129, %v128
  %v143 = vpack.c.b16 %v131, %v130
  %v144 = vpack.c.b16 %v133, %v132
  %v145 = vpack.c.b16 %v135, %v134
  %v146 = vpack.c.b16 %v137, %v136
  %v147 = vpack.c.b16 %v139, %v138
  %156 = vmatprep.subr.bf16.mxu0 0
  %157 = vmatpush1.bf16.msra.mxu0 %v140
  %158 = vmatprep.subr.bf16.mxu0 0
  %159 = vmatpush1.bf16.msra.mxu0 %v141
  %160 = vmatprep.subr.bf16.mxu0 0
  %161 = vmatpush1.bf16.msra.mxu0 %v142
  %162 = vmatprep.subr.bf16.mxu0 0
  %163 = vmatpush1.bf16.msra.mxu0 %v143
  %164 = vmatprep.subr.bf16.mxu0 0
  %165 = vmatpush1.bf16.msra.mxu0 %v144
  %166 = vmatprep.subr.bf16.mxu0 0
  %167 = vmatpush1.bf16.msra.mxu0 %v145
  %168 = vmatprep.subr.bf16.mxu0 0
  %169 = vmatpush1.bf16.msra.mxu0 %v146
  %170 = vmatprep.subr.bf16.mxu0 0
  %171 = vmatpush1.bf16.msra.mxu0 %v147
  %172 = vmatprep.subr.bf16.mxu0 0
  %173 = vmatpush1.bf16.msra.mxu0 0
  %174 = vmatprep.subr.bf16.mxu0 0
  %175 = vmatpush1.bf16.msra.mxu0 0
  %176 = vmatprep.subr.bf16.mxu0 0
  %177 = vmatpush1.bf16.msra.mxu0 0
  %178 = vmatprep.subr.bf16.mxu0 0
  %179 = vmatpush1.bf16.msra.mxu0 0
  %180 = vmatprep.subr.bf16.mxu0 0
  %181 = vmatpush1.bf16.msra.mxu0 0
  %182 = vmatprep.subr.bf16.mxu0 0
  %183 = vmatpush1.bf16.msra.mxu0 0
  %184 = vmatprep.subr.bf16.mxu0 0
  %185 = vmatpush1.bf16.msra.mxu0 0
  %186 = vmatprep.subr.bf16.mxu0 0
  %187 = vmatpush1.bf16.msra.mxu0 0
  %188 = vmatprep.mubr.bf16.mxu0 0
  %189 = vmatmul.mubr.bf16.gmra.mrb[0].mxu0 %v92
  %v190 = vpop.f32.mrb[0].mxu0
  %v191 = vadd.f32 %v58, %v190
  %v192 = vpop.f32.mrb[0].mxu0
  %v193 = vpop.f32.mrb[0].mxu0
  %v194 = vadd.f32 %v58, %v193
  %v195 = vpop.f32.mrb[0].mxu0
  %196 = vmatprep.mubr.bf16.mxu0 0
  %197 = vmatmul.mubr.bf16.gmra.mrb[0].mxu0 %v93
  %v198 = vpop.f32.mrb[0].mxu0
  %v199 = vadd.f32 %v58, %v198
  %v200 = vpop.f32.mrb[0].mxu0
  %v201 = vpop.f32.mrb[0].mxu0
  %v202 = vadd.f32 %v58, %v201
  %v203 = vpop.f32.mrb[0].mxu0
  %204 = vmatprep.mubr.bf16.mxu0 0
  %205 = vmatmul.mubr.bf16.gmra.mrb[0].mxu0 %v94
  %v206 = vpop.f32.mrb[0].mxu0
  %v207 = vadd.f32 %v58, %v206
  %v208 = vpop.f32.mrb[0].mxu0
  %v209 = vpop.f32.mrb[0].mxu0
  %v210 = vadd.f32 %v58, %v209
  %v211 = vpop.f32.mrb[0].mxu0
  %212 = vmatprep.mubr.bf16.mxu0 0
  %213 = vmatmul.mubr.bf16.gmra.mrb[0].mxu0 %v95
  %v214 = vpop.f32.mrb[0].mxu0
  %v215 = vadd.f32 %v58, %v214
  %v216 = vpop.f32.mrb[0].mxu0
  %v217 = vpop.f32.mrb[0].mxu0
  %v218 = vadd.f32 %v58, %v217
  %v219 = vpop.f32.mrb[0].mxu0
  %220 = vmatprep.mubr.bf16.mxu0 0
  %221 = vmatmul.mubr.bf16.gmra.mrb[0].mxu0 %v96
  %v222 = vpop.f32.mrb[0].mxu0
  %v223 = vadd.f32 %v58, %v222
  %v224 = vpop.f32.mrb[0].mxu0
  %v225 = vpop.f32.mrb[0].mxu0
  %v226 = vadd.f32 %v58, %v225
  %v227 = vpop.f32.mrb[0].mxu0
  %228 = vmatprep.mubr.bf16.mxu0 0
  %229 = vmatmul.mubr.bf16.gmra.mrb[0].mxu0 %v97
  %v230 = vpop.f32.mrb[0].mxu0
  %v231 = vadd.f32 %v58, %v230
  %v232 = vpop.f32.mrb[0].mxu0
  %v233 = vpop.f32.mrb[0].mxu0
  %v234 = vadd.f32 %v58, %v233
  %v235 = vpop.f32.mrb[0].mxu0
  %236 = vmatprep.mubr.bf16.mxu0 0
  %237 = vmatmul.mubr.bf16.gmra.mrb[0].mxu0 %v98
  %v238 = vpop.f32.mrb[0].mxu0
  %v239 = vadd.f32 %v58, %v238
  %v240 = vpop.f32.mrb[0].mxu0
  %v241 = vpop.f32.mrb[0].mxu0
  %v242 = vadd.f32 %v58, %v241
  %v243 = vpop.f32.mrb[0].mxu0
  %244 = vmatprep.mubr.bf16.mxu0 0
  %245 = vmatmul.mubr.bf16.gmra.mrb[0].mxu0 %v99
  %v246 = vpop.f32.mrb[0].mxu0
  %v247 = vadd.f32 %v58, %v246
  %v248 = vpop.f32.mrb[0].mxu0
  %v249 = vpop.f32.mrb[0].mxu0
  %v250 = vadd.f32 %v58, %v249
  %v251 = vpop.f32.mrb[0].mxu0
  %252 = vdwg.mxu0
  %vm253 = vcmask 261120
  %v254 = vsel %vm253, %v191, 0.0
  %255 = vadd.xlane.f32.xlu0 %v254
  %v256 = vpop.xlane.xlu0 %255
  %v257 = vsel %vm253, %v194, 0.0
  %258 = vadd.xlane.f32.xlu0 %v257
  %v259 = vpop.xlane.xlu0 %258
  %v260 = vsel %vm253, %v199, 0.0
  %261 = vadd.xlane.f32.xlu0 %v260
  %v262 = vpop.xlane.xlu0 %261
  %v263 = vsel %vm253, %v202, 0.0
  %264 = vadd.xlane.f32.xlu0 %v263
  %v265 = vpop.xlane.xlu0 %264
  %v266 = vsel %vm253, %v207, 0.0
  %267 = vadd.xlane.f32.xlu0 %v266
  %v268 = vpop.xlane.xlu0 %267
  %v269 = vsel %vm253, %v210, 0.0
  %270 = vadd.xlane.f32.xlu0 %v269
  %v271 = vpop.xlane.xlu0 %270
  %v272 = vsel %vm253, %v215, 0.0
  %273 = vadd.xlane.f32.xlu0 %v272
  %v274 = vpop.xlane.xlu0 %273
  %v275 = vsel %vm253, %v218, 0.0
  %276 = vadd.xlane.f32.xlu0 %v275
  %v277 = vpop.xlane.xlu0 %276
  %v278 = vsel %vm253, %v223, 0.0
  %279 = vadd.xlane.f32.xlu0 %v278
  %v280 = vpop.xlane.xlu0 %279
  %v281 = vsel %vm253, %v226, 0.0
  %282 = vadd.xlane.f32.xlu0 %v281
  %v283 = vpop.xlane.xlu0 %282
  %v284 = vsel %vm253, %v231, 0.0
  %285 = vadd.xlane.f32.xlu0 %v284
  %v286 = vpop.xlane.xlu0 %285
  %v287 = vsel %vm253, %v234, 0.0
  %288 = vadd.xlane.f32.xlu0 %v287
  %v289 = vpop.xlane.xlu0 %288
  %v290 = vsel %vm253, %v239, 0.0
  %291 = vadd.xlane.f32.xlu0 %v290
  %v292 = vpop.xlane.xlu0 %291
  %v293 = vsel %vm253, %v242, 0.0
  %294 = vadd.xlane.f32.xlu0 %v293
  %v295 = vpop.xlane.xlu0 %294
  %v296 = vsel %vm253, %v247, 0.0
  %297 = vadd.xlane.f32.xlu0 %v296
  %v298 = vpop.xlane.xlu0 %297
  %v299 = vsel %vm253, %v250, 0.0
  %300 = vadd.xlane.f32.xlu0 %v299
  %v301 = vpop.xlane.xlu0 %300
  %v302 = vrcp.pop 32.0
  %v303 = vmul.f32 %v256, %v302
  %v304 = vmul.f32 %v259, %v302
  %v305 = vmul.f32 %v262, %v302
  %v306 = vmul.f32 %v265, %v302
  %v307 = vmul.f32 %v268, %v302
  %v308 = vmul.f32 %v271, %v302
  %v309 = vmul.f32 %v274, %v302
  %v310 = vmul.f32 %v277, %v302
  %v311 = vmul.f32 %v280, %v302
  %v312 = vmul.f32 %v283, %v302
  %v313 = vmul.f32 %v286, %v302
  %v314 = vmul.f32 %v289, %v302
  %v315 = vmul.f32 %v292, %v302
  %v316 = vmul.f32 %v295, %v302
  %v317 = vmul.f32 %v298, %v302
  %v318 = vmul.f32 %v301, %v302
  %v319 = vsub.f32 %v191, %v303
  %v320 = vsub.f32 %v194, %v304
  %v321 = vsub.f32 %v199, %v305
  %v322 = vsub.f32 %v202, %v306
  %v323 = vsub.f32 %v207, %v307
  %v324 = vsub.f32 %v210, %v308
  %v325 = vsub.f32 %v215, %v309
  %v326 = vsub.f32 %v218, %v310
  %v327 = vsub.f32 %v223, %v311
  %v328 = vsub.f32 %v226, %v312
  %v329 = vsub.f32 %v231, %v313
  %v330 = vsub.f32 %v234, %v314
  %v331 = vsub.f32 %v239, %v315
  %v332 = vsub.f32 %v242, %v316
  %v333 = vsub.f32 %v247, %v317
  %v334 = vsub.f32 %v250, %v318
  %v335 = vmul.f32 %v319, %v319
  %v336 = vmul.f32 %v320, %v320
  %v337 = vmul.f32 %v321, %v321
  %v338 = vmul.f32 %v322, %v322
  %v339 = vmul.f32 %v323, %v323
  %v340 = vmul.f32 %v324, %v324
  %v341 = vmul.f32 %v325, %v325
  %v342 = vmul.f32 %v326, %v326
  %v343 = vmul.f32 %v327, %v327
  %v344 = vmul.f32 %v328, %v328
  %v345 = vmul.f32 %v329, %v329
  %v346 = vmul.f32 %v330, %v330
  %v347 = vmul.f32 %v331, %v331
  %v348 = vmul.f32 %v332, %v332
  %v349 = vmul.f32 %v333, %v333
  %v350 = vmul.f32 %v334, %v334
  %v351 = vsel %vm253, %v335, 0.0
  %352 = vadd.xlane.f32.xlu0 %v351
  %v353 = vpop.xlane.xlu0 %352
  %v354 = vsel %vm253, %v336, 0.0
  %355 = vadd.xlane.f32.xlu0 %v354
  %v356 = vpop.xlane.xlu0 %355
  %v357 = vsel %vm253, %v337, 0.0
  %358 = vadd.xlane.f32.xlu0 %v357
  %v359 = vpop.xlane.xlu0 %358
  %v360 = vsel %vm253, %v338, 0.0
  %361 = vadd.xlane.f32.xlu0 %v360
  %v362 = vpop.xlane.xlu0 %361
  %v363 = vsel %vm253, %v339, 0.0
  %364 = vadd.xlane.f32.xlu0 %v363
  %v365 = vpop.xlane.xlu0 %364
  %v366 = vsel %vm253, %v340, 0.0
  %367 = vadd.xlane.f32.xlu0 %v366
  %v368 = vpop.xlane.xlu0 %367
  %v369 = vsel %vm253, %v341, 0.0
  %370 = vadd.xlane.f32.xlu0 %v369
  %v371 = vpop.xlane.xlu0 %370
  %v372 = vsel %vm253, %v342, 0.0
  %373 = vadd.xlane.f32.xlu0 %v372
  %v374 = vpop.xlane.xlu0 %373
  %v375 = vsel %vm253, %v343, 0.0
  %376 = vadd.xlane.f32.xlu0 %v375
  %v377 = vpop.xlane.xlu0 %376
  %v378 = vsel %vm253, %v344, 0.0
  %379 = vadd.xlane.f32.xlu0 %v378
  %v380 = vpop.xlane.xlu0 %379
  %v381 = vsel %vm253, %v345, 0.0
  %382 = vadd.xlane.f32.xlu0 %v381
  %v383 = vpop.xlane.xlu0 %382
  %v384 = vsel %vm253, %v346, 0.0
  %385 = vadd.xlane.f32.xlu0 %v384
  %v386 = vpop.xlane.xlu0 %385
  %v387 = vsel %vm253, %v347, 0.0
  %388 = vadd.xlane.f32.xlu0 %v387
  %v389 = vpop.xlane.xlu0 %388
  %v390 = vsel %vm253, %v348, 0.0
  %391 = vadd.xlane.f32.xlu0 %v390
  %v392 = vpop.xlane.xlu0 %391
  %v393 = vsel %vm253, %v349, 0.0
  %394 = vadd.xlane.f32.xlu0 %v393
  %v395 = vpop.xlane.xlu0 %394
  %v396 = vsel %vm253, %v350, 0.0
  %397 = vadd.xlane.f32.xlu0 %v396
  %v398 = vpop.xlane.xlu0 %397
  %v399 = vmul.f32 %v353, %v302
  %v400 = vmul.f32 %v356, %v302
  %v401 = vmul.f32 %v359, %v302
  %v402 = vmul.f32 %v362, %v302
  %v403 = vmul.f32 %v365, %v302
  %v404 = vmul.f32 %v368, %v302
  %v405 = vmul.f32 %v371, %v302
  %v406 = vmul.f32 %v374, %v302
  %v407 = vmul.f32 %v377, %v302
  %v408 = vmul.f32 %v380, %v302
  %v409 = vmul.f32 %v383, %v302
  %v410 = vmul.f32 %v386, %v302
  %v411 = vmul.f32 %v389, %v302
  %v412 = vmul.f32 %v392, %v302
  %v413 = vmul.f32 %v395, %v302
  %v414 = vmul.f32 %v398, %v302
  %v415 = vadd.f32 %v399, 1e-05
  %v416 = vadd.f32 %v400, 1e-05
  %v417 = vadd.f32 %v401, 1e-05
  %v418 = vadd.f32 %v402, 1e-05
  %v419 = vadd.f32 %v403, 1e-05
  %v420 = vadd.f32 %v404, 1e-05
  %v421 = vadd.f32 %v405, 1e-05
  %v422 = vadd.f32 %v406, 1e-05
  %v423 = vadd.f32 %v407, 1e-05
  %v424 = vadd.f32 %v408, 1e-05
  %v425 = vadd.f32 %v409, 1e-05
  %v426 = vadd.f32 %v410, 1e-05
  %v427 = vadd.f32 %v411, 1e-05
  %v428 = vadd.f32 %v412, 1e-05
  %v429 = vadd.f32 %v413, 1e-05
  %v430 = vadd.f32 %v414, 1e-05
  %v431 = vrsqrt.pop %v415
  %v432 = vrsqrt.pop %v416
  %v433 = vrsqrt.pop %v417
  %v434 = vrsqrt.pop %v418
  %v435 = vrsqrt.pop %v419
  %v436 = vrsqrt.pop %v420
  %v437 = vrsqrt.pop %v421
  %v438 = vrsqrt.pop %v422
  %v439 = vrsqrt.pop %v423
  %v440 = vrsqrt.pop %v424
  %v441 = vrsqrt.pop %v425
  %v442 = vrsqrt.pop %v426
  %v443 = vrsqrt.pop %v427
  %v444 = vrsqrt.pop %v428
  %v445 = vrsqrt.pop %v429
  %v446 = vrsqrt.pop %v430
  %v447 = vmul.f32 %v319, %v431
  %v448 = vmul.f32 %v320, %v432
  %v449 = vmul.f32 %v321, %v433
  %v450 = vmul.f32 %v322, %v434
  %v451 = vmul.f32 %v323, %v435
  %v452 = vmul.f32 %v324, %v436
  %v453 = vmul.f32 %v325, %v437
  %v454 = vmul.f32 %v326, %v438
  %v455 = vmul.f32 %v327, %v439
  %v456 = vmul.f32 %v328, %v440
  %v457 = vmul.f32 %v329, %v441
  %v458 = vmul.f32 %v330, %v442
  %v459 = vmul.f32 %v331, %v443
  %v460 = vmul.f32 %v332, %v444
  %v461 = vmul.f32 %v333, %v445
  %v462 = vmul.f32 %v334, %v446
  %v463 = vld [vmem:[%s3] sm:$0x1]
  %v465 = vlaneseq
  %v466 = vshrl.u32 %v465, 7
  %v467 = vsub.s32 0, %v466
  %v468 = vrot.slane %v463, %v467
  %v470 = vmul.f32 %v447, %v468
  %v471 = vmul.f32 %v448, %v468
  %v472 = vmul.f32 %v449, %v468
  %v473 = vmul.f32 %v450, %v468
  %v474 = vmul.f32 %v451, %v468
  %v475 = vmul.f32 %v452, %v468
  %v476 = vmul.f32 %v453, %v468
  %v477 = vmul.f32 %v454, %v468
  %v478 = vmul.f32 %v455, %v468
  %v479 = vmul.f32 %v456, %v468
  %v480 = vmul.f32 %v457, %v468
  %v481 = vmul.f32 %v458, %v468
  %v482 = vmul.f32 %v459, %v468
  %v483 = vmul.f32 %v460, %v468
  %v484 = vmul.f32 %v461, %v468
  %v485 = vmul.f32 %v462, %v468
  %v486 = vld [vmem:[%s4] sm:$0x1]
  %v488 = vlaneseq
  %v489 = vshrl.u32 %v488, 7
  %v490 = vsub.s32 0, %v489
  %v491 = vrot.slane %v486, %v490
  %v493 = vadd.f32 %v470, %v491
  %v494 = vadd.f32 %v471, %v491
  %v495 = vadd.f32 %v472, %v491
  %v496 = vadd.f32 %v473, %v491
  %v497 = vadd.f32 %v474, %v491
  %v498 = vadd.f32 %v475, %v491
  %v499 = vadd.f32 %v476, %v491
  %v500 = vadd.f32 %v477, %v491
  %v501 = vadd.f32 %v478, %v491
  %v502 = vadd.f32 %v479, %v491
  %v503 = vadd.f32 %v480, %v491
  %v504 = vadd.f32 %v481, %v491
  %v505 = vadd.f32 %v482, %v491
  %v506 = vadd.f32 %v483, %v491
  %v507 = vadd.f32 %v484, %v491
  %v508 = vadd.f32 %v485, %v491
  %v509 = vpack.c.bf16 %v494, %v493
  %v510 = vpack.c.bf16 %v496, %v495
  %v511 = vpack.c.bf16 %v498, %v497
  %v512 = vpack.c.bf16 %v500, %v499
  %v513 = vpack.c.bf16 %v502, %v501
  %v514 = vpack.c.bf16 %v504, %v503
  %v515 = vpack.c.bf16 %v506, %v505
  %v516 = vpack.c.bf16 %v508, %v507
  %v525 = vunpack.c.l.b16 %v509
  %v526 = vunpack.c.h.b16 %v509
  %v527 = vunpack.c.l.b16 %v510
  %v528 = vunpack.c.h.b16 %v510
  %v529 = vunpack.c.l.b16 %v511
  %v530 = vunpack.c.h.b16 %v511
  %v531 = vunpack.c.l.b16 %v512
  %v532 = vunpack.c.h.b16 %v512
  %v533 = vunpack.c.l.b16 %v513
  %v534 = vunpack.c.h.b16 %v513
  %v535 = vunpack.c.l.b16 %v514
  %v536 = vunpack.c.h.b16 %v514
  %v537 = vunpack.c.l.b16 %v515
  %v538 = vunpack.c.h.b16 %v515
  %v539 = vunpack.c.l.b16 %v516
  %v540 = vunpack.c.h.b16 %v516
  %v541 = vpack.c.b16 %v525, %v525
  %v542 = vpack.c.b16 %v526, %v526
  %v543 = vpack.c.b16 %v527, %v527
  %v544 = vpack.c.b16 %v528, %v528
  %v545 = vpack.c.b16 %v529, %v529
  %v546 = vpack.c.b16 %v530, %v530
  %v547 = vpack.c.b16 %v531, %v531
  %v548 = vpack.c.b16 %v532, %v532
  %v549 = vpack.c.b16 %v533, %v533
  %v550 = vpack.c.b16 %v534, %v534
  %v551 = vpack.c.b16 %v535, %v535
  %v552 = vpack.c.b16 %v536, %v536
  %v553 = vpack.c.b16 %v537, %v537
  %v554 = vpack.c.b16 %v538, %v538
  %v555 = vpack.c.b16 %v539, %v539
  %v556 = vpack.c.b16 %v540, %v540
  %vm573 = vcmask 257024
  %574 = vst.msk [vmem:[%s5] sm:$0xf] %vm573, %v541
  %575 = vst.msk [vmem:[%s5 + $0x4] sm:$0xf] %vm573, %v542
  %576 = vst.msk [vmem:[%s5 + $0x8] sm:$0xf] %vm573, %v543
  %577 = vst.msk [vmem:[%s5 + $0xc] sm:$0xf] %vm573, %v544
  %578 = vst.msk [vmem:[%s5 + $0x10] sm:$0xf] %vm573, %v545
  %579 = vst.msk [vmem:[%s5 + $0x14] sm:$0xf] %vm573, %v546
  %580 = vst.msk [vmem:[%s5 + $0x18] sm:$0xf] %vm573, %v547
  %581 = vst.msk [vmem:[%s5 + $0x1c] sm:$0xf] %vm573, %v548
  %582 = vst.msk [vmem:[%s5 + $0x20] sm:$0xf] %vm573, %v549
  %583 = vst.msk [vmem:[%s5 + $0x24] sm:$0xf] %vm573, %v550
  %584 = vst.msk [vmem:[%s5 + $0x28] sm:$0xf] %vm573, %v551
  %585 = vst.msk [vmem:[%s5 + $0x2c] sm:$0xf] %vm573, %v552
  %586 = vst.msk [vmem:[%s5 + $0x30] sm:$0xf] %vm573, %v553
  %587 = vst.msk [vmem:[%s5 + $0x34] sm:$0xf] %vm573, %v554
  %588 = vst.msk [vmem:[%s5 + $0x38] sm:$0xf] %vm573, %v555
  %589 = vst.msk [vmem:[%s5 + $0x3c] sm:$0xf] %vm573, %v556
  // Predicated region
  $region22: #{tpu_custom_call.1} parent=0 // pred_check
    _
  $region23: #{tpu_custom_call.1} parent=0 // pred_check_branch
    %591 = sbr.rel (0) target = $region25
  $region24: #{tpu_custom_call.1} parent=0 // pred_region
    _
  $region25: #{tpu_custom_call.1} parent=0 // pred_fallthru
    _
  // Predicated region
  $region26: #{tpu_custom_call.1} parent=0 // pred_check
    _
  $region27: #{tpu_custom_call.1} parent=0 // pred_check_branch
    %593 = sbr.rel (0) target = $region29
  $region28: #{tpu_custom_call.1} parent=0 // pred_region
    _
  $region29: #{tpu_custom_call.1} parent=0 // pred_fallthru
    _

</llo_original>
